<compile_context>
chip_gen: v7x
topology: tpu7x:2x2x1
jax: 0.10.0
libtpu: 0.0.40
codegen_flags: <defaults>
</compile_context>

<pallas_src>
import functools

import jax
import jax.numpy as jnp
from jax import lax
from jax.experimental import pallas as pl
from jax.experimental.pallas import tpu as pltpu

ALPHA = 0.8
GAMMA = 2.0

LANES = 128
MAX_BLOCK_ROWS = 4096          # ~2 MiB f32 per input per grid step
NCORES = 2                     # outer "parallel" grid axis (v7x megacore;
                               # harmless on single-TensorCore chips)


def _round_up(a, b):
    return (a + b - 1) // b * b


def _comb_loss_sums_kernel(x_ref, t_ref, o_ref, *, n_valid, block_elems,
                           inner_n, needs_mask, hard_targets):
    """Accumulates 4 partial sums into this core's (4, 8, 128) output block.

    Output planes (each an (8, 128) vreg of partial sums):
      [0] sum(x * t)              (intersection)
      [1] sum(x + t)              (sum_x + sum_t, fused)
      [2] sum(per-element BCE)
      [3] count of (x >= 0.5) == (t >= 0.5)   (micro-F1 == accuracy)
    """
    c = pl.program_id(0)          # "core" / parallel axis
    i = pl.program_id(1)          # reduction axis

    @pl.when(i == 0)
    def _init():
        o_ref[...] = jnp.zeros_like(o_ref)

    x = x_ref[...].astype(jnp.float32)
    t = t_ref[...].astype(jnp.float32)

    def _fold(v):
        # (R, 128) -> (R//8, 8, 128) -> (8, 128): plain vreg adds on the VPU,
        # no cross-lane XLU work anywhere in the kernel.
        return jnp.sum(v.reshape(-1, 8, LANES), axis=0)

    def _accum(xv, tv, mask):
        if mask is not None:
            # Zero padded / OOB-garbage / duplicated elements *before* any
            # arithmetic so NaN/Inf garbage cannot leak into the sums.
            xv = jnp.where(mask, xv, 0.0)
            tv = jnp.where(mask, tv, 0.0)
        prod = xv * tv
        tot = xv + tv
        t_hi = tv >= 0.5
        if hard_targets:
            # Single-log fast path (only valid for hard 0/1 targets).
            # Masked elems: xv=0, t_hi=False -> log(1-0)=0 -> bce=0 exactly.
            bce = -jnp.maximum(jnp.log(jnp.where(t_hi, xv, 1.0 - xv)), -100.0)
        else:
            # torch.binary_cross_entropy semantics (soft targets), log clamp
            # at -100 happens BEFORE the t* multiply so masked xv=tv=0
            # contributes exactly 0.
            log_x = jnp.maximum(jnp.log(xv), -100.0)
            log_1mx = jnp.maximum(jnp.log(1.0 - xv), -100.0)
            bce = -(tv * log_x + (1.0 - tv) * log_1mx)
        correct = ((xv >= 0.5) == t_hi).astype(jnp.float32)
        if mask is not None:
            correct = jnp.where(mask, correct, 0.0)
        o_ref[0] += _fold(prod)
        o_ref[1] += _fold(tot)
        o_ref[2] += _fold(bce)
        o_ref[3] += _fold(correct)

    if not needs_mask:
        # Statically known: every grid block is a distinct, fully-valid block.
        _accum(x, t, None)
    else:
        b = c * inner_n + i                    # true global block id
        start = b * block_elems
        is_full = (start + block_elems) <= n_valid

        @pl.when(is_full)
        def _steady():
            _accum(x, t, None)

        @pl.when(jnp.logical_not(is_full))
        def _edge():
            rows, lanes = x.shape
            ridx = lax.broadcasted_iota(jnp.int32, (rows, lanes), 0)
            lidx = lax.broadcasted_iota(jnp.int32, (rows, lanes), 1)
            valid = (ridx * lanes + lidx) < (n_valid - start)
            _accum(x, t, valid)


def _reduce_sums(x_flat, t_flat, max_block_rows, hard_targets):
    n = x_flat.shape[0]
    rows_total = pl.cdiv(n, LANES)
    lane_pad = rows_total * LANES - n
    if lane_pad:
        # TODO(synk): only hit when numel % 128 != 0 (pad < 128 elements, but
        # XLA still materializes a full copy of both inputs for it).
        x_flat = jnp.pad(x_flat, (0, lane_pad))
        t_flat = jnp.pad(t_flat, (0, lane_pad))
    x2 = x_flat.reshape(rows_total, LANES)
    t2 = t_flat.reshape(rows_total, LANES)

    # Balanced block sizes (multiples of 8 sublanes); partial / duplicated
    # blocks are masked inside the kernel instead of padding inputs in HBM.
    n_splits = pl.cdiv(rows_total, max_block_rows)
    block_rows = _round_up(min(max_block_rows, pl.cdiv(rows_total, n_splits)), 8)
    n_blocks = pl.cdiv(rows_total, block_rows)
    block_elems = block_rows * LANES

    inner_n = pl.cdiv(n_blocks, NCORES)
    # Static: do all grid points see distinct, fully-valid blocks?
    needs_mask = (NCORES * inner_n * block_elems) != n

    def in_map(c, i):
        # Clamp so the DMA window always starts in bounds; the kernel masks
        # the duplicated / partial block by its *true* element range.
        return (jnp.minimum(c * inner_n + i, n_blocks - 1), 0)

    kernel = functools.partial(
        _comb_loss_sums_kernel,
        n_valid=n, block_elems=block_elems, inner_n=inner_n,
        needs_mask=needs_mask, hard_targets=hard_targets)

    partials = pl.pallas_call(
        kernel,
        out_shape=jax.ShapeDtypeStruct((NCORES * 4, 8, LANES), jnp.float32),
        grid_spec=pltpu.PrefetchScalarGridSpec(
            num_scalar_prefetch=0,
            grid=(NCORES, inner_n),
            in_specs=[
                pl.BlockSpec((block_rows, LANES), in_map),
                pl.BlockSpec((block_rows, LANES), in_map),
            ],
            out_specs=pl.BlockSpec((4, 8, LANES), lambda c, i: (c, 0, 0)),
        ),
        compiler_params=pltpu.CompilerParams(
            dimension_semantics=("parallel", "arbitrary"),
            vmem_limit_bytes=32 * 1024 * 1024,
        ),
    )(x2, t2)
    return partials


@functools.partial(
    jax.jit,
    static_argnames=("alpha", "gamma", "smooth", "max_block_rows",
                     "hard_targets"))
def comb_loss(inputs, targets, alpha=ALPHA, gamma=GAMMA, smooth=1.0,
              max_block_rows=MAX_BLOCK_ROWS, hard_targets=False):
    x = inputs.reshape(-1)
    t = targets.reshape(-1)
    n = x.shape[0]

    partials = _reduce_sums(x, t, max_block_rows, hard_targets)
    sums = partials.reshape(NCORES, 4, 8, LANES).sum(axis=(0, 2, 3))
    inter, sum_xt, bce_sum, correct = sums[0], sums[1], sums[2], sums[3]
    n_f = jnp.float32(n)

    # DiceLoss: -log((2*I + s) / (sum_x + sum_t + s))
    dice = (2.0 * inter + smooth) / (sum_xt + smooth)
    dice_score = -jnp.log(dice)

    # IoU: (I + s) / (sum_x + sum_t - I + s)
    iou_value = (inter + smooth) / (sum_xt - inter + smooth)

    # Mean BCE + focal loss
    bce = bce_sum / n_f
    bce_exp = jnp.exp(-bce)
    focal_loss = alpha * (1.0 - bce_exp) ** gamma * bce

    # micro-F1 == accuracy of 0.5-thresholded predictions.
    f1_score = correct / n_f

    return f1_score * dice_score + (1.0 - iou_value) * focal_loss


def _reference(inputs, targets, alpha=ALPHA, gamma=GAMMA, smooth=1.0):
    """Pure-JAX reference for sanity checking."""
    x = inputs.reshape(-1).astype(jnp.float32)
    t = targets.reshape(-1).astype(jnp.float32)
    inter = jnp.sum(x * t)
    dice = (2.0 * inter + smooth) / (jnp.sum(x) + jnp.sum(t) + smooth)
    dice_score = -jnp.log(dice)
    union = jnp.sum(x + t) - inter
    iou = (inter + smooth) / (union + smooth)
    bce = jnp.mean(-(t * jnp.maximum(jnp.log(x), -100.0)
                     + (1 - t) * jnp.maximum(jnp.log(1 - x), -100.0)))
    focal = alpha * (1.0 - jnp.exp(-bce)) ** gamma * bce
    f1 = jnp.mean(((x >= 0.5) == (t >= 0.5)).astype(jnp.float32))
    return f1 * dice_score + (1.0 - iou) * focal


if __name__ == "__main__":
    key = jax.random.PRNGKey(0)
    k1, k2, k3, k4 = jax.random.split(key, 4)

    # inputs are probabilities (as expected by binary_cross_entropy),
    # targets are 0/1 floats.
    inputs = jax.random.uniform(k1, (2, 4, 16, 16), jnp.float32,
                                minval=0.01, maxval=0.99)
    targets = (jax.random.uniform(k2, (2, 4, 16, 16)) > 0.5).astype(jnp.float32)
    ref = _reference(inputs, targets)

    # 1) Default config: single real block + one masked duplicated block.
    loss = jax.block_until_ready(comb_loss(inputs, targets))
    assert jnp.allclose(loss, ref, rtol=1e-4, atol=1e-5), (loss, ref)

    # 2) Exact block-aligned split across the 2-slot parallel axis (no-mask path).
    loss_b = jax.block_until_ready(comb_loss(inputs, targets, max_block_rows=8))
    assert jnp.allclose(loss_b, ref, rtol=1e-4, atol=1e-5), (loss_b, ref)

    # 3) Hard-target single-log BCE fast path (targets here are hard 0/1).
    loss_h = jax.block_until_ready(comb_loss(inputs, targets, hard_targets=True))
    assert jnp.allclose(loss_h, ref, rtol=1e-4, atol=1e-5), (loss_h, ref)

    # Non-128-multiple element count: lane pad + partial last block + multi-block grid.
    inputs2 = jax.random.uniform(k3, (2, 4, 30, 30), jnp.float32,
                                 minval=0.01, maxval=0.99)
    targets2 = (jax.random.uniform(k4, (2, 4, 30, 30)) > 0.5).astype(jnp.float32)
    ref2 = _reference(inputs2, targets2)

    # 4) Even block count: all grid slots map to distinct blocks, last one partial.
    loss2 = jax.block_until_ready(comb_loss(inputs2, targets2, max_block_rows=8))
    assert jnp.allclose(loss2, ref2, rtol=1e-4, atol=1e-5), (loss2, ref2)

    # 5) Odd block count: exercises the clamped + fully-masked duplicate block.
    loss3 = jax.block_until_ready(comb_loss(inputs2, targets2, max_block_rows=24))
    assert jnp.allclose(loss3, ref2, rtol=1e-4, atol=1e-5), (loss3, ref2)

    print("KERNEL_OK")
</pallas_src>

<mosaic_0001>
module attributes {stable_mosaic.version = 11 : i64} {
  func.func @_comb_loss_sums_kernel(%arg0: i32, %arg1: i32, %arg2: memref<16x128xf32, #tpu.memory_space<vmem>>, %arg3: memref<16x128xf32, #tpu.memory_space<vmem>>, %arg4: memref<4x8x128xf32, #tpu.memory_space<vmem>>) attributes {dimension_semantics = [#tpu.dimension_semantics<parallel>, #tpu.dimension_semantics<arbitrary>], iteration_bounds = array<i64: 2, 1>, scalar_prefetch = 0 : i64, scratch_operands = 0 : i64, tpu.core_type = #tpu.core_type<tc>, window_params = [{transform_indices = @transform_0, window_bounds = array<i64: 16, 128>}, {transform_indices = @transform_1, window_bounds = array<i64: 16, 128>}, {transform_indices = @transform_2, window_bounds = array<i64: 4, 8, 128>}]} {
    %c0_i32 = arith.constant 0 : i32
    %0 = arith.cmpi eq, %arg1, %c0_i32 : i32
    %1 = arith.extui %0 : i1 to i32
    %c0_i32_0 = arith.constant 0 : i32
    %2 = arith.cmpi ne, %1, %c0_i32_0 : i32
    scf.if %2 {
      %cst = arith.constant 0.000000e+00 : f32
      %15 = vector.broadcast %cst : f32 to vector<4x8x128xf32>
      %c0_8 = arith.constant 0 : index
      %c0_9 = arith.constant 0 : index
      %c0_10 = arith.constant 0 : index
      %16 = vector.load %arg4[%c0_8, %c0_9, %c0_10] : memref<4x8x128xf32, #tpu.memory_space<vmem>>, vector<4x8x128xf32>
      tpu.vector_store %arg4[%c0_8, %c0_9, %c0_10], %15 {strides = array<i32>} : memref<4x8x128xf32, #tpu.memory_space<vmem>>, vector<4x8x128xf32>,
    } else {
    }
    %c0 = arith.constant 0 : index
    %c0_1 = arith.constant 0 : index
    %3 = vector.load %arg2[%c0, %c0_1] : memref<16x128xf32, #tpu.memory_space<vmem>>, vector<16x128xf32>
    %c0_2 = arith.constant 0 : index
    %c0_3 = arith.constant 0 : index
    %4 = vector.load %arg3[%c0_2, %c0_3] : memref<16x128xf32, #tpu.memory_space<vmem>>, vector<16x128xf32>
    %c1_i32 = arith.constant 1 : i32
    %5 = arith.muli %arg0, %c1_i32 : i32
    %6 = arith.addi %5, %arg1 : i32
    %c2048_i32 = arith.constant 2048 : i32
    %7 = arith.muli %6, %c2048_i32 : i32
    %c2048_i32_4 = arith.constant 2048 : i32
    %8 = arith.addi %7, %c2048_i32_4 : i32
    %c2048_i32_5 = arith.constant 2048 : i32
    %9 = arith.cmpi sle, %8, %c2048_i32_5 : i32
    %10 = arith.extui %9 : i1 to i32
    %c0_i32_6 = arith.constant 0 : i32
    %11 = arith.cmpi ne, %10, %c0_i32_6 : i32
    scf.if %11 {
      %15 = arith.mulf %3, %4 : vector<16x128xf32>
      %16 = arith.addf %3, %4 : vector<16x128xf32>
      %cst = arith.constant 5.000000e-01 : f32
      %17 = vector.broadcast %cst : f32 to vector<16x128xf32>
      %18 = arith.cmpf oge, %4, %17 : vector<16x128xf32>
      %19 = math.log %3 : vector<16x128xf32>
      %cst_8 = arith.constant -1.000000e+02 : f32
      %20 = vector.broadcast %cst_8 : f32 to vector<16x128xf32>
      %21 = arith.maximumf %19, %20 : vector<16x128xf32>
      %cst_9 = arith.constant 1.000000e+00 : f32
      %22 = vector.broadcast %cst_9 : f32 to vector<16x128xf32>
      %23 = arith.subf %22, %3 : vector<16x128xf32>
      %24 = math.log %23 : vector<16x128xf32>
      %cst_10 = arith.constant -1.000000e+02 : f32
      %25 = vector.broadcast %cst_10 : f32 to vector<16x128xf32>
      %26 = arith.maximumf %24, %25 : vector<16x128xf32>
      %27 = arith.mulf %4, %21 : vector<16x128xf32>
      %cst_11 = arith.constant 1.000000e+00 : f32
      %28 = vector.broadcast %cst_11 : f32 to vector<16x128xf32>
      %29 = arith.subf %28, %4 : vector<16x128xf32>
      %30 = arith.mulf %29, %26 : vector<16x128xf32>
      %31 = arith.addf %27, %30 : vector<16x128xf32>
      %cst_12 = arith.constant 0.000000e+00 : f32
      %32 = vector.broadcast %cst_12 : f32 to vector<16x128xf32>
      %33 = arith.subf %32, %31 : vector<16x128xf32>
      %cst_13 = arith.constant 5.000000e-01 : f32
      %34 = vector.broadcast %cst_13 : f32 to vector<16x128xf32>
      %35 = arith.cmpf oge, %3, %34 : vector<16x128xf32>
      %36 = arith.xori %35, %18 : vector<16x128xi1>
      %cst_14 = arith.constant dense<true> : vector<16x128xi1>
      %37 = arith.xori %36, %cst_14 : vector<16x128xi1>
      %38 = arith.extui %37 : vector<16x128xi1> to vector<16x128xi32>
      %39 = arith.sitofp %38 : vector<16x128xi32> to vector<16x128xf32>
      %c0_15 = arith.constant 0 : index
      %c0_16 = arith.constant 0 : index
      %c0_17 = arith.constant 0 : index
      %40 = vector.load %arg4[%c0_15, %c0_16, %c0_17] : memref<4x8x128xf32, #tpu.memory_space<vmem>>, vector<1x8x128xf32>
      %41 = vector.shape_cast %40 : vector<1x8x128xf32> to vector<8x128xf32>
      %42 = vector.shape_cast %15 : vector<16x128xf32> to vector<2x8x128xf32>
      %cst_18 = arith.constant dense<0.000000e+00> : vector<8x128xf32>
      %43 = vector.multi_reduction <add>, %42, %cst_18 [0] : vector<2x8x128xf32> to vector<8x128xf32>
      %44 = arith.addf %41, %43 : vector<8x128xf32>
      %c0_19 = arith.constant 0 : index
      %c0_20 = arith.constant 0 : index
      %c0_21 = arith.constant 0 : index
      %45 = vector.load %arg4[%c0_19, %c0_20, %c0_21] : memref<4x8x128xf32, #tpu.memory_space<vmem>>, vector<1x8x128xf32>
      %46 = vector.shape_cast %45 : vector<1x8x128xf32> to vector<8x128xf32>
      %47 = vector.shape_cast %44 : vector<8x128xf32> to vector<1x8x128xf32>
      tpu.vector_store %arg4[%c0_19, %c0_20, %c0_21], %47 {strides = array<i32>} : memref<4x8x128xf32, #tpu.memory_space<vmem>>, vector<1x8x128xf32>,
      %c1 = arith.constant 1 : index
      %c0_22 = arith.constant 0 : index
      %c0_23 = arith.constant 0 : index
      %48 = vector.load %arg4[%c1, %c0_22, %c0_23] : memref<4x8x128xf32, #tpu.memory_space<vmem>>, vector<1x8x128xf32>
      %49 = vector.shape_cast %48 : vector<1x8x128xf32> to vector<8x128xf32>
      %50 = vector.shape_cast %16 : vector<16x128xf32> to vector<2x8x128xf32>
      %cst_24 = arith.constant dense<0.000000e+00> : vector<8x128xf32>
      %51 = vector.multi_reduction <add>, %50, %cst_24 [0] : vector<2x8x128xf32> to vector<8x128xf32>
      %52 = arith.addf %49, %51 : vector<8x128xf32>
      %c1_25 = arith.constant 1 : index
      %c0_26 = arith.constant 0 : index
      %c0_27 = arith.constant 0 : index
      %53 = vector.load %arg4[%c1_25, %c0_26, %c0_27] : memref<4x8x128xf32, #tpu.memory_space<vmem>>, vector<1x8x128xf32>
      %54 = vector.shape_cast %53 : vector<1x8x128xf32> to vector<8x128xf32>
      %55 = vector.shape_cast %52 : vector<8x128xf32> to vector<1x8x128xf32>
      tpu.vector_store %arg4[%c1_25, %c0_26, %c0_27], %55 {strides = array<i32>} : memref<4x8x128xf32, #tpu.memory_space<vmem>>, vector<1x8x128xf32>,
      %c2 = arith.constant 2 : index
      %c0_28 = arith.constant 0 : index
      %c0_29 = arith.constant 0 : index
      %56 = vector.load %arg4[%c2, %c0_28, %c0_29] : memref<4x8x128xf32, #tpu.memory_space<vmem>>, vector<1x8x128xf32>
      %57 = vector.shape_cast %56 : vector<1x8x128xf32> to vector<8x128xf32>
      %58 = vector.shape_cast %33 : vector<16x128xf32> to vector<2x8x128xf32>
      %cst_30 = arith.constant dense<0.000000e+00> : vector<8x128xf32>
      %59 = vector.multi_reduction <add>, %58, %cst_30 [0] : vector<2x8x128xf32> to vector<8x128xf32>
      %60 = arith.addf %57, %59 : vector<8x128xf32>
      %c2_31 = arith.constant 2 : index
      %c0_32 = arith.constant 0 : index
      %c0_33 = arith.constant 0 : index
      %61 = vector.load %arg4[%c2_31, %c0_32, %c0_33] : memref<4x8x128xf32, #tpu.memory_space<vmem>>, vector<1x8x128xf32>
      %62 = vector.shape_cast %61 : vector<1x8x128xf32> to vector<8x128xf32>
      %63 = vector.shape_cast %60 : vector<8x128xf32> to vector<1x8x128xf32>
      tpu.vector_store %arg4[%c2_31, %c0_32, %c0_33], %63 {strides = array<i32>} : memref<4x8x128xf32, #tpu.memory_space<vmem>>, vector<1x8x128xf32>,
      %c3 = arith.constant 3 : index
      %c0_34 = arith.constant 0 : index
      %c0_35 = arith.constant 0 : index
      %64 = vector.load %arg4[%c3, %c0_34, %c0_35] : memref<4x8x128xf32, #tpu.memory_space<vmem>>, vector<1x8x128xf32>
      %65 = vector.shape_cast %64 : vector<1x8x128xf32> to vector<8x128xf32>
      %66 = vector.shape_cast %39 : vector<16x128xf32> to vector<2x8x128xf32>
      %cst_36 = arith.constant dense<0.000000e+00> : vector<8x128xf32>
      %67 = vector.multi_reduction <add>, %66, %cst_36 [0] : vector<2x8x128xf32> to vector<8x128xf32>
      %68 = arith.addf %65, %67 : vector<8x128xf32>
      %c3_37 = arith.constant 3 : index
      %c0_38 = arith.constant 0 : index
      %c0_39 = arith.constant 0 : index
      %69 = vector.load %arg4[%c3_37, %c0_38, %c0_39] : memref<4x8x128xf32, #tpu.memory_space<vmem>>, vector<1x8x128xf32>
      %70 = vector.shape_cast %69 : vector<1x8x128xf32> to vector<8x128xf32>
      %71 = vector.shape_cast %68 : vector<8x128xf32> to vector<1x8x128xf32>
      tpu.vector_store %arg4[%c3_37, %c0_38, %c0_39], %71 {strides = array<i32>} : memref<4x8x128xf32, #tpu.memory_space<vmem>>, vector<1x8x128xf32>,
    } else {
    }
    %true = arith.constant true
    %12 = arith.xori %9, %true : i1
    %13 = arith.extui %12 : i1 to i32
    %c0_i32_7 = arith.constant 0 : i32
    %14 = arith.cmpi ne, %13, %c0_i32_7 : i32
    scf.if %14 {
      %15 = tpu.iota {dimensions = array<i32: 0>} : vector<16x128xi32>
      %16 = tpu.iota {dimensions = array<i32: 1>} : vector<16x128xi32>
      %c128_i32 = arith.constant 128 : i32
      %17 = vector.broadcast %c128_i32 : i32 to vector<16x128xi32>
      %18 = arith.muli %15, %17 : vector<16x128xi32>
      %19 = arith.addi %18, %16 : vector<16x128xi32>
      %c2048_i32_8 = arith.constant 2048 : i32
      %20 = arith.subi %c2048_i32_8, %7 : i32
      %21 = vector.broadcast %20 : i32 to vector<16x128xi32>
      %22 = arith.cmpi slt, %19, %21 : vector<16x128xi32>
      %cst = arith.constant 0.000000e+00 : f32
      %23 = vector.broadcast %cst : f32 to vector<16x128xf32>
      %24 = arith.select %22, %3, %23 : vector<16x128xi1>, vector<16x128xf32>
      %cst_9 = arith.constant 0.000000e+00 : f32
      %25 = vector.broadcast %cst_9 : f32 to vector<16x128xf32>
      %26 = arith.select %22, %4, %25 : vector<16x128xi1>, vector<16x128xf32>
      %27 = arith.mulf %24, %26 : vector<16x128xf32>
      %28 = arith.addf %24, %26 : vector<16x128xf32>
      %cst_10 = arith.constant 5.000000e-01 : f32
      %29 = vector.broadcast %cst_10 : f32 to vector<16x128xf32>
      %30 = arith.cmpf oge, %26, %29 : vector<16x128xf32>
      %31 = math.log %24 : vector<16x128xf32>
      %cst_11 = arith.constant -1.000000e+02 : f32
      %32 = vector.broadcast %cst_11 : f32 to vector<16x128xf32>
      %33 = arith.maximumf %31, %32 : vector<16x128xf32>
      %cst_12 = arith.constant 1.000000e+00 : f32
      %34 = vector.broadcast %cst_12 : f32 to vector<16x128xf32>
      %35 = arith.subf %34, %24 : vector<16x128xf32>
      %36 = math.log %35 : vector<16x128xf32>
      %cst_13 = arith.constant -1.000000e+02 : f32
      %37 = vector.broadcast %cst_13 : f32 to vector<16x128xf32>
      %38 = arith.maximumf %36, %37 : vector<16x128xf32>
      %39 = arith.mulf %26, %33 : vector<16x128xf32>
      %cst_14 = arith.constant 1.000000e+00 : f32
      %40 = vector.broadcast %cst_14 : f32 to vector<16x128xf32>
      %41 = arith.subf %40, %26 : vector<16x128xf32>
      %42 = arith.mulf %41, %38 : vector<16x128xf32>
      %43 = arith.addf %39, %42 : vector<16x128xf32>
      %cst_15 = arith.constant 0.000000e+00 : f32
      %44 = vector.broadcast %cst_15 : f32 to vector<16x128xf32>
      %45 = arith.subf %44, %43 : vector<16x128xf32>
      %cst_16 = arith.constant 5.000000e-01 : f32
      %46 = vector.broadcast %cst_16 : f32 to vector<16x128xf32>
      %47 = arith.cmpf oge, %24, %46 : vector<16x128xf32>
      %48 = arith.xori %47, %30 : vector<16x128xi1>
      %cst_17 = arith.constant dense<true> : vector<16x128xi1>
      %49 = arith.xori %48, %cst_17 : vector<16x128xi1>
      %50 = arith.extui %49 : vector<16x128xi1> to vector<16x128xi32>
      %51 = arith.sitofp %50 : vector<16x128xi32> to vector<16x128xf32>
      %cst_18 = arith.constant 0.000000e+00 : f32
      %52 = vector.broadcast %cst_18 : f32 to vector<16x128xf32>
      %53 = arith.select %22, %51, %52 : vector<16x128xi1>, vector<16x128xf32>
      %c0_19 = arith.constant 0 : index
      %c0_20 = arith.constant 0 : index
      %c0_21 = arith.constant 0 : index
      %54 = vector.load %arg4[%c0_19, %c0_20, %c0_21] : memref<4x8x128xf32, #tpu.memory_space<vmem>>, vector<1x8x128xf32>
      %55 = vector.shape_cast %54 : vector<1x8x128xf32> to vector<8x128xf32>
      %56 = vector.shape_cast %27 : vector<16x128xf32> to vector<2x8x128xf32>
      %cst_22 = arith.constant dense<0.000000e+00> : vector<8x128xf32>
      %57 = vector.multi_reduction <add>, %56, %cst_22 [0] : vector<2x8x128xf32> to vector<8x128xf32>
      %58 = arith.addf %55, %57 : vector<8x128xf32>
      %c0_23 = arith.constant 0 : index
      %c0_24 = arith.constant 0 : index
      %c0_25 = arith.constant 0 : index
      %59 = vector.load %arg4[%c0_23, %c0_24, %c0_25] : memref<4x8x128xf32, #tpu.memory_space<vmem>>, vector<1x8x128xf32>
      %60 = vector.shape_cast %59 : vector<1x8x128xf32> to vector<8x128xf32>
      %61 = vector.shape_cast %58 : vector<8x128xf32> to vector<1x8x128xf32>
      tpu.vector_store %arg4[%c0_23, %c0_24, %c0_25], %61 {strides = array<i32>} : memref<4x8x128xf32, #tpu.memory_space<vmem>>, vector<1x8x128xf32>,
      %c1 = arith.constant 1 : index
      %c0_26 = arith.constant 0 : index
      %c0_27 = arith.constant 0 : index
      %62 = vector.load %arg4[%c1, %c0_26, %c0_27] : memref<4x8x128xf32, #tpu.memory_space<vmem>>, vector<1x8x128xf32>
      %63 = vector.shape_cast %62 : vector<1x8x128xf32> to vector<8x128xf32>
      %64 = vector.shape_cast %28 : vector<16x128xf32> to vector<2x8x128xf32>
      %cst_28 = arith.constant dense<0.000000e+00> : vector<8x128xf32>
      %65 = vector.multi_reduction <add>, %64, %cst_28 [0] : vector<2x8x128xf32> to vector<8x128xf32>
      %66 = arith.addf %63, %65 : vector<8x128xf32>
      %c1_29 = arith.constant 1 : index
      %c0_30 = arith.constant 0 : index
      %c0_31 = arith.constant 0 : index
      %67 = vector.load %arg4[%c1_29, %c0_30, %c0_31] : memref<4x8x128xf32, #tpu.memory_space<vmem>>, vector<1x8x128xf32>
      %68 = vector.shape_cast %67 : vector<1x8x128xf32> to vector<8x128xf32>
      %69 = vector.shape_cast %66 : vector<8x128xf32> to vector<1x8x128xf32>
      tpu.vector_store %arg4[%c1_29, %c0_30, %c0_31], %69 {strides = array<i32>} : memref<4x8x128xf32, #tpu.memory_space<vmem>>, vector<1x8x128xf32>,
      %c2 = arith.constant 2 : index
      %c0_32 = arith.constant 0 : index
      %c0_33 = arith.constant 0 : index
      %70 = vector.load %arg4[%c2, %c0_32, %c0_33] : memref<4x8x128xf32, #tpu.memory_space<vmem>>, vector<1x8x128xf32>
      %71 = vector.shape_cast %70 : vector<1x8x128xf32> to vector<8x128xf32>
      %72 = vector.shape_cast %45 : vector<16x128xf32> to vector<2x8x128xf32>
      %cst_34 = arith.constant dense<0.000000e+00> : vector<8x128xf32>
      %73 = vector.multi_reduction <add>, %72, %cst_34 [0] : vector<2x8x128xf32> to vector<8x128xf32>
      %74 = arith.addf %71, %73 : vector<8x128xf32>
      %c2_35 = arith.constant 2 : index
      %c0_36 = arith.constant 0 : index
      %c0_37 = arith.constant 0 : index
      %75 = vector.load %arg4[%c2_35, %c0_36, %c0_37] : memref<4x8x128xf32, #tpu.memory_space<vmem>>, vector<1x8x128xf32>
      %76 = vector.shape_cast %75 : vector<1x8x128xf32> to vector<8x128xf32>
      %77 = vector.shape_cast %74 : vector<8x128xf32> to vector<1x8x128xf32>
      tpu.vector_store %arg4[%c2_35, %c0_36, %c0_37], %77 {strides = array<i32>} : memref<4x8x128xf32, #tpu.memory_space<vmem>>, vector<1x8x128xf32>,
      %c3 = arith.constant 3 : index
      %c0_38 = arith.constant 0 : index
      %c0_39 = arith.constant 0 : index
      %78 = vector.load %arg4[%c3, %c0_38, %c0_39] : memref<4x8x128xf32, #tpu.memory_space<vmem>>, vector<1x8x128xf32>
      %79 = vector.shape_cast %78 : vector<1x8x128xf32> to vector<8x128xf32>
      %80 = vector.shape_cast %53 : vector<16x128xf32> to vector<2x8x128xf32>
      %cst_40 = arith.constant dense<0.000000e+00> : vector<8x128xf32>
      %81 = vector.multi_reduction <add>, %80, %cst_40 [0] : vector<2x8x128xf32> to vector<8x128xf32>
      %82 = arith.addf %79, %81 : vector<8x128xf32>
      %c3_41 = arith.constant 3 : index
      %c0_42 = arith.constant 0 : index
      %c0_43 = arith.constant 0 : index
      %83 = vector.load %arg4[%c3_41, %c0_42, %c0_43] : memref<4x8x128xf32, #tpu.memory_space<vmem>>, vector<1x8x128xf32>
      %84 = vector.shape_cast %83 : vector<1x8x128xf32> to vector<8x128xf32>
      %85 = vector.shape_cast %82 : vector<8x128xf32> to vector<1x8x128xf32>
      tpu.vector_store %arg4[%c3_41, %c0_42, %c0_43], %85 {strides = array<i32>} : memref<4x8x128xf32, #tpu.memory_space<vmem>>, vector<1x8x128xf32>,
    } else {
    }
    return
  }
  func.func @transform_0(%arg0: i32, %arg1: i32) -> (i32, i32) {
    %c1_i32 = arith.constant 1 : i32
    %0 = arith.muli %arg0, %c1_i32 : i32
    %1 = arith.addi %0, %arg1 : i32
    %c0_i32 = arith.constant 0 : i32
    %2 = arith.minsi %1, %c0_i32 : i32
    %c0_i32_0 = arith.constant 0 : i32
    %c0_i32_1 = arith.constant 0 : i32
    return %2, %c0_i32_0 : i32, i32
  }
  func.func @transform_1(%arg0: i32, %arg1: i32) -> (i32, i32) {
    %c1_i32 = arith.constant 1 : i32
    %0 = arith.muli %arg0, %c1_i32 : i32
    %1 = arith.addi %0, %arg1 : i32
    %c0_i32 = arith.constant 0 : i32
    %2 = arith.minsi %1, %c0_i32 : i32
    %c0_i32_0 = arith.constant 0 : i32
    %c0_i32_1 = arith.constant 0 : i32
    return %2, %c0_i32_0 : i32, i32
  }
  func.func @transform_2(%arg0: i32, %arg1: i32) -> (i32, i32, i32) {
    %c0_i32 = arith.constant 0 : i32
    %c0_i32_0 = arith.constant 0 : i32
    %c0_i32_1 = arith.constant 0 : i32
    return %arg0, %c0_i32, %c0_i32_0 : i32, i32, i32
  }
}

</mosaic_0001>

<llo_original>
// kernel: comb_loss.1
$region0: #{comb_loss.1}
  #allocation0 [shape = 'u32[]', space=smem, size = 0x4, offset = 0x4, fixed_abs, tag = 'smem constant byte address 0x4 - core index']
  #allocation1 [shape = 'u32[144,128]{1,0:T(1,128)}', space=vmem, size = 0x12000, scoped, tag = 'internal scratch']
  %s0 = inlined_call_operand.vmem [shape: f32[16,128], index: 0, kind: input, shape index: {}]
  %s1 = inlined_call_operand.vmem [shape: f32[16,128], index: 1, kind: input, shape index: {}]
  %s2 = inlined_call_operand.vmem [shape: f32[8,8,128], index: 2, kind: output, shape index: {}]
  %s3 = sld [smem:[#allocation0]]
  $region53: #{comb_loss.1} parent=0
    _
  %s5 = ssub.s32 1, %s3
  %s6 = scalar_select 0, %s5, %s3
  loop: start=0, step=1, limit=4
  $region2: #{comb_loss.1} parent=0 // loop_pre_header
    _
  $region3: #{comb_loss.1} parent=0 // loop_header
    %s8 = sphi 0, %s12
    %p9 = scmp.ge.s32.totalorder %s8, 4
    %s15 = sphi 0, %s27
    %s16 = sphi 0, %s23
    %s17 = sphi 0, %s15
    %s18 = sphi 0, %s16
    %s19 = sphi 0, %s17
    %s20 = sphi 0, %s18
    %s36 = sphi 0, %s38
    %s39 = sphi 0, %s36
    %s40 = sphi 0, %s39
    %s56 = sphi 0, %s40
    %s68 = sphi 0, %s70
    %s71 = sphi 0, %s68
    %s72 = sphi 0, %s71
    %s88 = sphi 0, %s72
    %s94 = sphi 0, %s96
    %s97 = sphi 0, %s94
    %s98 = sphi 0, %s97
    %s114 = sphi 0, %s98
  $region4: #{comb_loss.1} parent=0 // loop_header_branch
    %11 = sbr.rel (%p9) target = $region8
  $region5: #{comb_loss.1} parent=0 // loop_body
    %s13 = ssub.s32 %s8, 1
    %s14 = ssub.s32 %s8, 2
    %s21 = sadd.s32 1, %s16
    %p22 = scmp.ge.s32.totalorder %s21, 1
    %s23 = scalar_select %p22, 0, %s21
    %s24 = sadd.s32 1, %s15
    %s25 = scalar_select %p22, %s24, %s15
    %p26 = scmp.ge.s32.totalorder %s25, 2
    %s27 = scalar_select %p26, 0, %s25
    %s28 = sadd.s32 %s15, %s16
    %p29 = scmp.lt.s32.totalorder %s28, 0
    %s30 = scalar_select %p29, %s28, 0
    %s31 = sadd.s32 %s27, %s23
    %p32 = scmp.lt.s32.totalorder %s31, 0
    %s33 = scalar_select %p32, %s31, 0
    %s34 = ssub.s32 %s30, %s33
    %p35 = scmp.eq.s32.totalorder %s34, 0
    %s37 = sadd.s32 %s36, 1
    %s38 = scalar_select %p35, %s36, %s37
    %p41 = pneg %p35
    %p42 = scmp.eq.s32.totalorder %s8, 1
    %p43 = por %p41, %p42
    %p44 = scmp.ne.s32.totalorder %s36, %s39
    %p45 = scmp.eq.s32.totalorder %s8, 0
    %p46 = por %p44, %p45
    %p47 = scmp.ne.s32.totalorder %s36, %s39
    %p48 = scmp.eq.s32.totalorder %s13, 1
    %p49 = por %p47, %p48
    %p50 = scmp.ne.s32.totalorder %s39, %s40
    %p51 = scmp.eq.s32.totalorder %s13, 0
    %p52 = por %p50, %p51
    %p53 = scmp.ne.s32.totalorder %s39, %s40
    %p54 = scmp.eq.s32.totalorder %s14, 1
    %p55 = por %p53, %p54
    %p57 = scmp.ne.s32.totalorder %s40, %s56
    %p58 = scmp.eq.s32.totalorder %s14, 0
    %p59 = por %p57, %p58
    %s60 = sadd.s32 %s15, %s16
    %p61 = scmp.lt.s32.totalorder %s60, 0
    %s62 = scalar_select %p61, %s60, 0
    %s63 = sadd.s32 %s27, %s23
    %p64 = scmp.lt.s32.totalorder %s63, 0
    %s65 = scalar_select %p64, %s63, 0
    %s66 = ssub.s32 %s62, %s65
    %p67 = scmp.eq.s32.totalorder %s66, 0
    %s69 = sadd.s32 %s68, 1
    %s70 = scalar_select %p67, %s68, %s69
    %p73 = pneg %p67
    %p74 = scmp.eq.s32.totalorder %s8, 1
    %p75 = por %p73, %p74
    %p76 = scmp.ne.s32.totalorder %s68, %s71
    %p77 = scmp.eq.s32.totalorder %s8, 0
    %p78 = por %p76, %p77
    %p79 = scmp.ne.s32.totalorder %s68, %s71
    %p80 = scmp.eq.s32.totalorder %s13, 1
    %p81 = por %p79, %p80
    %p82 = scmp.ne.s32.totalorder %s71, %s72
    %p83 = scmp.eq.s32.totalorder %s13, 0
    %p84 = por %p82, %p83
    %p85 = scmp.ne.s32.totalorder %s71, %s72
    %p86 = scmp.eq.s32.totalorder %s14, 1
    %p87 = por %p85, %p86
    %p89 = scmp.ne.s32.totalorder %s72, %s88
    %p90 = scmp.eq.s32.totalorder %s14, 0
    %p91 = por %p89, %p90
    %s92 = ssub.s32 %s15, %s27
    %p93 = scmp.eq.s32.totalorder %s92, 0
    %s95 = sadd.s32 %s94, 1
    %s96 = scalar_select %p93, %s94, %s95
    %p99 = pneg %p93
    %p100 = scmp.eq.s32.totalorder %s8, 1
    %p101 = por %p99, %p100
    %p102 = scmp.ne.s32.totalorder %s94, %s97
    %p103 = scmp.eq.s32.totalorder %s8, 0
    %p104 = por %p102, %p103
    %p105 = scmp.ne.s32.totalorder %s94, %s97
    %p106 = scmp.eq.s32.totalorder %s13, 1
    %p107 = por %p105, %p106
    %p108 = scmp.ne.s32.totalorder %s97, %s98
    %p109 = scmp.eq.s32.totalorder %s13, 0
    %p110 = por %p108, %p109
    %p111 = scmp.ne.s32.totalorder %s97, %s98
    %p112 = scmp.eq.s32.totalorder %s14, 1
    %p113 = por %p111, %p112
    %p115 = scmp.ne.s32.totalorder %s98, %s114
    %p116 = scmp.eq.s32.totalorder %s14, 0
    %p117 = por %p115, %p116
    %p118 = scmp.le.s32.totalorder 1, %s8
    %p119 = scmp.lt.s32.totalorder %s8, 3
    %p120 = pnand %p118, %p119
    %p121 = pneg %p120
    // Predicated region
    $region9: #{comb_loss.1} parent=5 // pred_check
      _
    $region10: #{comb_loss.1} parent=5 // pred_check_branch
      %123 = sbr.rel (%p120) target = $region12
    $region11: #{comb_loss.1} parent=5 // pred_region
      %s124 = ssub.s32 %s8, 1
    $region12: #{comb_loss.1} parent=5 // pred_fallthru
      _
    %p125 = scmp.lt.s32.totalorder %s8, 2
    // Predicated region
    $region13: #{comb_loss.1} parent=5 // pred_check
      %p126 = pneg %p125
    $region14: #{comb_loss.1} parent=5 // pred_check_branch
      %128 = sbr.rel (%p126) target = $region16
    $region15: #{comb_loss.1} parent=5 // pred_region
      // Predicated region
      $region17: #{comb_loss.1} parent=15 // pred_check
        %p129 = pneg %p46
      $region18: #{comb_loss.1} parent=15 // pred_check_branch
        %131 = sbr.rel (%p129) target = $region20
      $region19: #{comb_loss.1} parent=15 // pred_region
        %s132 = sadd.s32 %s15, %s16
        %p133 = scmp.lt.s32.totalorder %s132, 0
        %s134 = scalar_select %p133, %s132, 0
        %s135 = smul.u32 2, %s134
        %p136 = scmp.lt.s32.totalorder %s135, 1
        %s137 = scalar_select %p136, %s135, 1
        %s138 = smul.addr %s137, 8
        %s139 = scalar_lea.vmem %s0, %s138
        %s140 = sadd.s32 %s15, %s16
        %p141 = scmp.lt.s32.totalorder %s140, 0
        %s142 = scalar_select %p141, %s140, 0
        %s143 = smul.u32 2, %s142
      $region20: #{comb_loss.1} parent=15 // pred_fallthru
        _
      // Predicated region
      $region21: #{comb_loss.1} parent=15 // pred_check
        %p144 = pneg %p78
      $region22: #{comb_loss.1} parent=15 // pred_check_branch
        %146 = sbr.rel (%p144) target = $region24
      $region23: #{comb_loss.1} parent=15 // pred_region
        %s147 = sadd.s32 %s15, %s16
        %p148 = scmp.lt.s32.totalorder %s147, 0
        %s149 = scalar_select %p148, %s147, 0
        %s150 = smul.u32 2, %s149
        %p151 = scmp.lt.s32.totalorder %s150, 1
        %s152 = scalar_select %p151, %s150, 1
        %s153 = smul.addr %s152, 8
        %s154 = scalar_lea.vmem %s1, %s153
        %s155 = sadd.s32 %s15, %s16
        %p156 = scmp.lt.s32.totalorder %s155, 0
        %s157 = scalar_select %p156, %s155, 0
        %s158 = smul.u32 2, %s157
      $region24: #{comb_loss.1} parent=15 // pred_fallthru
        _
    $region16: #{comb_loss.1} parent=5 // pred_fallthru
      _
    %p159 = scmp.le.s32.totalorder 1, %s8
    %p160 = scmp.lt.s32.totalorder %s8, 3
    %p161 = pnand %p159, %p160
    %p162 = pneg %p161
    // Predicated region
    $region25: #{comb_loss.1} parent=5 // pred_check
      _
    $region26: #{comb_loss.1} parent=5 // pred_check_branch
      %164 = sbr.rel (%p161) target = $region28
    $region27: #{comb_loss.1} parent=5 // pred_region
      %s165 = ssub.s32 %s8, 1
      %s166 = sadd.s32 %s17, %s18
      %p167 = scmp.lt.s32.totalorder %s166, 0
      %s168 = scalar_select %p167, %s166, 0
      %s169 = smul.u32 2, %s168
      %p170 = scmp.lt.s32.totalorder %s169, 1
      %s171 = scalar_select %p170, %s169, 1
      %s172 = smul.addr %s171, 8
      %s173 = scalar_lea.vmem %s0, %s172
      %p174 = pneg %p52
      %p175 = pneg %p49
      %s176 = sadd.s32 %s17, %s18
      %p177 = scmp.lt.s32.totalorder %s176, 0
      %s178 = scalar_select %p177, %s176, 0
      %s179 = smul.u32 2, %s178
      %p180 = scmp.lt.s32.totalorder %s179, 1
      %s181 = scalar_select %p180, %s179, 1
      %s182 = smul.addr %s181, 8
      %s183 = scalar_lea.vmem %s1, %s182
      %p184 = pneg %p84
      %p185 = pneg %p81
      %p186 = pneg %p110
      %p187 = pneg %p107
      %s188 = smul.u32 4, %s17
      %p189 = scmp.lt.s32.totalorder %s188, 7
      %s190 = scalar_select %p189, %s188, 7
      %s191 = smul.addr %s190, 8
      %s192 = scalar_lea.vmem %s2, %s191
      %s193 = sadd.s32 %s17, %s18
      %p194 = scmp.lt.s32.totalorder %s193, 0
      %s195 = scalar_select %p194, %s193, 0
      %s196 = smul.u32 2, %s195
      %p197 = scmp.lt.s32.totalorder %s196, 1
      %s198 = scalar_select %p197, %s196, 1
      %s199 = smul.addr %s198, 8
      %s200 = scalar_lea.vmem %s0, %s199
      %s201 = sadd.s32 %s17, %s18
      %p202 = scmp.lt.s32.totalorder %s201, 0
      %s203 = scalar_select %p202, %s201, 0
      %s204 = smul.u32 2, %s203
      %s205 = sadd.s32 %s17, %s18
      %p206 = scmp.lt.s32.totalorder %s205, 0
      %s207 = scalar_select %p206, %s205, 0
      %s208 = smul.u32 2, %s207
      %p209 = scmp.lt.s32.totalorder %s208, 1
      %s210 = scalar_select %p209, %s208, 1
      %s211 = smul.addr %s210, 8
      %s212 = scalar_lea.vmem %s1, %s211
      %s213 = sadd.s32 %s17, %s18
      %p214 = scmp.lt.s32.totalorder %s213, 0
      %s215 = scalar_select %p214, %s213, 0
      %s216 = smul.u32 2, %s215
      %s217 = smul.u32 4, %s17
      %p218 = scmp.lt.s32.totalorder %s217, 7
      %s219 = scalar_select %p218, %s217, 7
      %s220 = smul.addr %s219, 8
      %s221 = scalar_lea.vmem %s2, %s220
      %s222 = smul.u32 4, %s17
      %p223 = scmp.eq.s32.totalorder %s18, 0
      // Predicated region
      $region29: #{comb_loss.1} parent=27 // pred_check
        %p224 = pneg %p223
      $region30: #{comb_loss.1} parent=27 // pred_check_branch
        %226 = sbr.rel (%p224) target = $region32
      $region31: #{comb_loss.1} parent=27 // pred_region
        %227 = vst [vmem:[%s221] sm:$0xff] 0.0
        %228 = vst [vmem:[%s221 + $0x8] sm:$0xff] 0.0
        %229 = vst [vmem:[%s221 + $0x10] sm:$0xff] 0.0
        %230 = vst [vmem:[%s221 + $0x18] sm:$0xff] 0.0
      $region32: #{comb_loss.1} parent=27 // pred_fallthru
        _
      %v231 = vld [vmem:[%s200] sm:$0xff]
      %v232 = vld [vmem:[%s200 + $0x8] sm:$0xff]
      %v233 = vld [vmem:[%s212] sm:$0xff]
      %v234 = vld [vmem:[%s212 + $0x8] sm:$0xff]
      %s235 = sadd.s32 %s17, %s18
      %s236 = smul.u32 %s235, 2048
      %s237 = sadd.s32 %s236, 2048
      %p238 = scmp.le.s32.totalorder %s237, 2048
      // Predicated region
      $region33: #{comb_loss.1} parent=27 // pred_check
        %p239 = pneg %p238
      $region34: #{comb_loss.1} parent=27 // pred_check_branch
        %241 = sbr.rel (%p239) target = $region36
      $region35: #{comb_loss.1} parent=27 // pred_region
        %v242 = vmul.f32 %v231, %v233
        %v243 = vmul.f32 %v232, %v234
        %v244 = vadd.f32 %v231, %v233
        %v245 = vadd.f32 %v232, %v234
        %vm246 = vcmp.ge.f32.partialorder %v233, 0.5
        %vm247 = vcmp.ge.f32.partialorder %v234, 0.5
        %v248 = vlog2.pop %v231
        %v249 = vmul.f32 %v248, 0.6931472
        %v250 = vlog2.pop %v232
        %v251 = vmul.f32 %v250, 0.6931472
        %v252 = vmax.f32 %v249, -100.0
        %v253 = vmax.f32 %v251, -100.0
        %v254 = vsub.f32 1.0, %v231
        %v255 = vsub.f32 1.0, %v232
        %v256 = vlog2.pop %v254
        %v257 = vmul.f32 %v256, 0.6931472
        %v258 = vlog2.pop %v255
        %v259 = vmul.f32 %v258, 0.6931472
        %v260 = vmax.f32 %v257, -100.0
        %v261 = vmax.f32 %v259, -100.0
        %v262 = vmul.f32 %v233, %v252
        %v263 = vmul.f32 %v234, %v253
        %v264 = vsub.f32 1.0, %v233
        %v265 = vsub.f32 1.0, %v234
        %v266 = vmul.f32 %v264, %v260
        %v267 = vmul.f32 %v265, %v261
        %v268 = vadd.f32 %v262, %v266
        %v269 = vadd.f32 %v263, %v267
        %v270 = vsub.f32 0.0, %v268
        %v271 = vsub.f32 0.0, %v269
        %vm272 = vcmp.ge.f32.partialorder %v231, 0.5
        %vm273 = vcmp.ge.f32.partialorder %v232, 0.5
        %vm274 = vmxor %vm272, %vm246
        %vm275 = vmxor %vm273, %vm247
        %vm276 = vmxor %vm274, 1
        %vm277 = vmxor %vm275, 1
        %v278 = vsel %vm276, 1, 0
        %v279 = vsel %vm277, 1, 0
        %v280 = vcvt.s32.f32 %v278
        %v281 = vcvt.s32.f32 %v279
        %v282 = vld [vmem:[%s221] sm:$0xff]
        %v283 = vadd.f32 %v242, %v243
        %v284 = vadd.f32 %v282, %v283
        %285 = vst [vmem:[%s221] sm:$0xff] %v284
        %s286 = scalar_lea.vmem %s221, 8
        %v287 = vld [vmem:[%s286] sm:$0xff]
        %v288 = vadd.f32 %v244, %v245
        %v289 = vadd.f32 %v287, %v288
        %290 = vst [vmem:[%s286] sm:$0xff] %v289
        %s291 = scalar_lea.vmem %s221, 16
        %v292 = vld [vmem:[%s291] sm:$0xff]
        %v293 = vadd.f32 %v270, %v271
        %v294 = vadd.f32 %v292, %v293
        %295 = vst [vmem:[%s291] sm:$0xff] %v294
        %s296 = scalar_lea.vmem %s221, 24
        %v297 = vld [vmem:[%s296] sm:$0xff]
        %v298 = vadd.f32 %v280, %v281
        %v299 = vadd.f32 %v297, %v298
        %300 = vst [vmem:[%s296] sm:$0xff] %v299
      $region36: #{comb_loss.1} parent=27 // pred_fallthru
        _
      %p301 = scmp.gt.s32.totalorder %s237, 2048
      // Predicated region
      $region37: #{comb_loss.1} parent=27 // pred_check
        %p302 = pneg %p301
      $region38: #{comb_loss.1} parent=27 // pred_check_branch
        %304 = sbr.rel (%p302) target = $region40
      $region39: #{comb_loss.1} parent=27 // pred_region
        %v305 = vlaneseq
        %v306 = vshrl.u32 %v305, 7
        %v307 = vadd.s32 %v306, 8
        %v308 = vlaneseq
        %v309 = vand.u32 %v308, 127
        %v310 = vmul.u32 %v306, 128
        %v311 = vmul.u32 %v307, 128
        %v312 = vadd.s32 %v310, %v309
        %v313 = vadd.s32 %v311, %v309
        %s314 = ssub.s32 2048, %s236
        %v315 = vstv %s314
        %vm316 = vcmp.lt.s32.totalorder %v312, %v315
        %vm317 = vcmp.lt.s32.totalorder %v313, %v315
        %v318 = vsel %vm316, %v231, 0.0
        %v319 = vsel %vm317, %v232, 0.0
        %v320 = vsel %vm316, %v233, 0.0
        %v321 = vsel %vm317, %v234, 0.0
        %v322 = vmul.f32 %v318, %v320
        %v323 = vmul.f32 %v319, %v321
        %v324 = vadd.f32 %v318, %v320
        %v325 = vadd.f32 %v319, %v321
        %vm326 = vcmp.ge.f32.partialorder %v320, 0.5
        %vm327 = vcmp.ge.f32.partialorder %v321, 0.5
        %v328 = vlog2.pop %v318
        %v329 = vmul.f32 %v328, 0.6931472
        %v330 = vlog2.pop %v319
        %v331 = vmul.f32 %v330, 0.6931472
        %v332 = vmax.f32 %v329, -100.0
        %v333 = vmax.f32 %v331, -100.0
        %v334 = vsub.f32 1.0, %v318
        %v335 = vsub.f32 1.0, %v319
        %v336 = vlog2.pop %v334
        %v337 = vmul.f32 %v336, 0.6931472
        %v338 = vlog2.pop %v335
        %v339 = vmul.f32 %v338, 0.6931472
        %v340 = vmax.f32 %v337, -100.0
        %v341 = vmax.f32 %v339, -100.0
        %v342 = vmul.f32 %v320, %v332
        %v343 = vmul.f32 %v321, %v333
        %v344 = vsub.f32 1.0, %v320
        %v345 = vsub.f32 1.0, %v321
        %v346 = vmul.f32 %v344, %v340
        %v347 = vmul.f32 %v345, %v341
        %v348 = vadd.f32 %v342, %v346
        %v349 = vadd.f32 %v343, %v347
        %v350 = vsub.f32 0.0, %v348
        %v351 = vsub.f32 0.0, %v349
        %vm352 = vcmp.ge.f32.partialorder %v318, 0.5
        %vm353 = vcmp.ge.f32.partialorder %v319, 0.5
        %vm354 = vmxor %vm352, %vm326
        %vm355 = vmxor %vm353, %vm327
        %vm356 = vmxor %vm354, 1
        %vm357 = vmxor %vm355, 1
        %v358 = vsel %vm356, 1, 0
        %v359 = vsel %vm357, 1, 0
        %v360 = vcvt.s32.f32 %v358
        %v361 = vcvt.s32.f32 %v359
        %v362 = vsel %vm316, %v360, 0.0
        %v363 = vsel %vm317, %v361, 0.0
        %v364 = vld [vmem:[%s221] sm:$0xff]
        %v365 = vadd.f32 %v322, %v323
        %v366 = vadd.f32 %v364, %v365
        %367 = vst [vmem:[%s221] sm:$0xff] %v366
        %s368 = scalar_lea.vmem %s221, 8
        %v369 = vld [vmem:[%s368] sm:$0xff]
        %v370 = vadd.f32 %v324, %v325
        %v371 = vadd.f32 %v369, %v370
        %372 = vst [vmem:[%s368] sm:$0xff] %v371
        %s373 = scalar_lea.vmem %s221, 16
        %v374 = vld [vmem:[%s373] sm:$0xff]
        %v375 = vadd.f32 %v350, %v351
        %v376 = vadd.f32 %v374, %v375
        %377 = vst [vmem:[%s373] sm:$0xff] %v376
        %s378 = scalar_lea.vmem %s221, 24
        %v379 = vld [vmem:[%s378] sm:$0xff]
        %v380 = vadd.f32 %v362, %v363
        %v381 = vadd.f32 %v379, %v380
        %382 = vst [vmem:[%s378] sm:$0xff] %v381
      $region40: #{comb_loss.1} parent=27 // pred_fallthru
        _
      %s383 = smul.u32 4, %s17
      %p384 = scmp.lt.s32.totalorder %s383, 7
      %s385 = scalar_select %p384, %s383, 7
      %s386 = smul.addr %s385, 8
      %s387 = scalar_lea.vmem %s2, %s386
      // Predicated region
      $region41: #{comb_loss.1} parent=27 // pred_check
        %p388 = pneg %p107
      $region42: #{comb_loss.1} parent=27 // pred_check_branch
        %390 = sbr.rel (%p388) target = $region44
      $region43: #{comb_loss.1} parent=27 // pred_region
        %s391 = smul.u32 4, %s17
      $region44: #{comb_loss.1} parent=27 // pred_fallthru
        _
    $region28: #{comb_loss.1} parent=5 // pred_fallthru
      _
    %p392 = scmp.le.s32.totalorder 2, %s8
    // Predicated region
    $region45: #{comb_loss.1} parent=5 // pred_check
      %p393 = pneg %p392
    $region46: #{comb_loss.1} parent=5 // pred_check_branch
      %395 = sbr.rel (%p393) target = $region48
    $region47: #{comb_loss.1} parent=5 // pred_region
      %s396 = ssub.s32 %s8, 2
      // Predicated region
      $region49: #{comb_loss.1} parent=47 // pred_check
        %p397 = pneg %p113
      $region50: #{comb_loss.1} parent=47 // pred_check_branch
        %399 = sbr.rel (%p397) target = $region52
      $region51: #{comb_loss.1} parent=47 // pred_region
        %s400 = smul.u32 4, %s19
        %p401 = scmp.lt.s32.totalorder %s400, 7
        %s402 = scalar_select %p401, %s400, 7
        %s403 = smul.addr %s402, 8
        %s404 = scalar_lea.vmem %s2, %s403
      $region52: #{comb_loss.1} parent=47 // pred_fallthru
        _
    $region48: #{comb_loss.1} parent=5 // pred_fallthru
      _
  $region6: #{comb_loss.1} parent=0 // loop_footer
    %s12 = sadd.s32 1, %s8
  $region7: #{comb_loss.1} parent=0 // loop_footer_branch
    %7 = sbr.rel target = $region3
  $region8: #{comb_loss.1} parent=0 // loop_exit
    _

</llo_original>
